<compile_context>
chip_gen: v5e
topology: v5e:2x2
jax: 0.10.0
libtpu: 0.0.40
codegen_flags: <defaults>
</compile_context>

<pallas_src>
import functools

import jax
import jax.numpy as jnp
from jax.experimental import pallas as pl
from jax.experimental.pallas import tpu as pltpu


def _depth_ce_kernel(logits_ref, tgt_ref, depth_ref, out_ref, *, hw, need_mask):
    """Process one (C, tile) slab of pixels belonging to one batch row.

    grid = (N, num_lane_tiles).  Axis 0 ("parallel") is the batch row, axis 1
    ("arbitrary") is the sequential reduction over that row's pixel stream.
    The output block index is constant along axis 1, so out_ref stays resident
    in VMEM and acts as the accumulator.
    """
    i = pl.program_id(1)

    @pl.when(i == 0)
    def _():
        out_ref[...] = jnp.zeros_like(out_ref)

    logits = logits_ref[...].astype(jnp.float32)            # (C, T)
    tgt = tgt_ref[...]                                       # (1, T) int32
    depth = depth_ref[...].astype(jnp.float32)               # (1, T)

    c, t = logits.shape

    # Numerically-stable log-softmax cross-entropy along the channel axis.
    m = jnp.max(logits, axis=0, keepdims=True)                               # (1, T)
    lse = jnp.log(jnp.sum(jnp.exp(logits - m), axis=0, keepdims=True)) + m   # (1, T)

    cls_ids = jax.lax.broadcasted_iota(jnp.int32, (c, t), 0)
    picked = jnp.sum(jnp.where(cls_ids == tgt, logits, 0.0),
                     axis=0, keepdims=True)                                  # (1, T)

    weighted = depth * (lse - picked)                        # depth * CE, (1, T)

    if need_mask:
        # In-kernel mask of the partial last tile (replaces wrapper-side pad).
        # Compiled in only when HW is not a multiple of the lane tile.
        px = i * t + jax.lax.broadcasted_iota(jnp.int32, (1, t), 1)
        weighted = jnp.where(px < hw, weighted, 0.0)

    out_ref[...] += weighted                                 # lane-wide accumulator


def _pick_tile(num_classes, hw, *, max_tile=8192, block_budget_bytes=2 << 20):
    """C-aware lane tile: large enough to amortize per-grid-step overhead,
    small enough that a double-buffered (C, tile) f32 block stays well inside
    every generation's scoped-VMEM default (v5e 16 MiB scoped, v7x 64 MiB
    physical)."""
    t = (block_budget_bytes // (num_classes * 4)) // 128 * 128
    t = max(128, min(max_tile, t))
    if hw <= t:
        return hw   # single full-extent lane block (legal: equals full array dim)
    return t


def depth_adjusted_loss(logits_nchw, targets_nhw, depths_nhw, *, max_tile=8192):
    """Scalar f32 = mean(depths * cross_entropy(logits, targets, reduction='none'))."""
    N, C, H, W = logits_nchw.shape
    HW = H * W

    # Free (no-copy) reshapes only -- no NCHW transpose, no padding.
    logits = logits_nchw.reshape(N, C, HW)
    targets = targets_nhw.reshape(N, 1, HW).astype(jnp.int32)
    depths = depths_nhw.reshape(N, 1, HW)

    tile = _pick_tile(C, HW, max_tile=max_tile)
    n_tiles = pl.cdiv(HW, tile)
    need_mask = (HW % tile) != 0

    kernel = functools.partial(_depth_ce_kernel, hw=HW, need_mask=need_mask)

    partials = pl.pallas_call(
        kernel,
        out_shape=jax.ShapeDtypeStruct((N, 1, tile), jnp.float32),
        grid_spec=pltpu.PrefetchScalarGridSpec(
            num_scalar_prefetch=0,
            grid=(N, n_tiles),
            in_specs=[
                pl.BlockSpec((pl.Squeezed(), C, tile), lambda n, i: (n, 0, i)),  # logits
                pl.BlockSpec((pl.Squeezed(), 1, tile), lambda n, i: (n, 0, i)),  # targets
                pl.BlockSpec((pl.Squeezed(), 1, tile), lambda n, i: (n, 0, i)),  # depths
            ],
            out_specs=pl.BlockSpec((pl.Squeezed(), 1, tile), lambda n, i: (n, 0, 0)),
        ),
        compiler_params=pltpu.CompilerParams(
            dimension_semantics=("parallel", "arbitrary"),
        ),
    )(logits, targets, depths)

    # Tiny final reduction + mean division in the wrapper.
    return jnp.sum(partials) / jnp.float32(N * HW)


if __name__ == "__main__":
    def ref_loss(logits, targets, depths):
        logp = jax.nn.log_softmax(logits, axis=1)
        per_px = -jnp.take_along_axis(logp, targets[:, None, :, :], axis=1)[:, 0]
        return jnp.mean(depths * per_px)

    key = jax.random.PRNGKey(0)
    k1, k2, k3, k4 = jax.random.split(key, 4)

    # small deterministic example: per-pixel CE + depth map
    N, C, H, W = 2, 4, 16, 16
    logits = jax.random.normal(k1, (N, C, H, W), dtype=jnp.float32)
    targets = jax.random.randint(k2, (N, H, W), 0, C, dtype=jnp.int32)
    depths = jax.random.uniform(k3, (N, H, W), dtype=jnp.float32)

    loss = depth_adjusted_loss(logits, targets, depths)
    jax.block_until_ready(loss)
    assert jnp.allclose(loss, ref_loss(logits, targets, depths),
                        rtol=1e-5, atol=1e-5), loss

    # ragged case: H*W not a multiple of the lane tile -> exercises the
    # partial last block + in-kernel mask path and multi-tile accumulation.
    N2, C2, H2, W2 = 2, 5, 16, 20   # HW = 320
    kk1, kk2, kk3 = jax.random.split(k4, 3)
    logits2 = jax.random.normal(kk1, (N2, C2, H2, W2), dtype=jnp.float32)
    targets2 = jax.random.randint(kk2, (N2, H2, W2), 0, C2, dtype=jnp.int32)
    depths2 = jax.random.uniform(kk3, (N2, H2, W2), dtype=jnp.float32)

    loss2 = depth_adjusted_loss(logits2, targets2, depths2, max_tile=128)
    jax.block_until_ready(loss2)
    assert jnp.allclose(loss2, ref_loss(logits2, targets2, depths2),
                        rtol=1e-5, atol=1e-5), loss2

    print("KERNEL_OK")
</pallas_src>

<mosaic_0001>
module attributes {stable_mosaic.version = 11 : i64} {
  func.func @_depth_ce_kernel(%arg0: i32, %arg1: i32, %arg2: memref<1x4x256xf32, #tpu.memory_space<vmem>>, %arg3: memref<1x1x256xi32, #tpu.memory_space<vmem>>, %arg4: memref<1x1x256xf32, #tpu.memory_space<vmem>>, %arg5: memref<1x1x256xf32, #tpu.memory_space<vmem>>) attributes {dimension_semantics = [#tpu.dimension_semantics<parallel>, #tpu.dimension_semantics<arbitrary>], iteration_bounds = array<i64: 2, 1>, scalar_prefetch = 0 : i64, scratch_operands = 0 : i64, tpu.core_type = #tpu.core_type<tc>, window_params = [{transform_indices = @transform_0, window_bounds = array<i64: 1, 4, 256>}, {transform_indices = @transform_1, window_bounds = array<i64: 1, 1, 256>}, {transform_indices = @transform_2, window_bounds = array<i64: 1, 1, 256>}, {transform_indices = @transform_3, window_bounds = array<i64: 1, 1, 256>}]} {
    %c0_i32 = arith.constant 0 : i32
    %0 = arith.cmpi eq, %arg1, %c0_i32 : i32
    %1 = arith.extui %0 : i1 to i32
    %c0_i32_0 = arith.constant 0 : i32
    %2 = arith.cmpi ne, %1, %c0_i32_0 : i32
    scf.if %2 {
      %cst_18 = arith.constant 0.000000e+00 : f32
      %33 = vector.broadcast %cst_18 : f32 to vector<1x256xf32>
      %c0_19 = arith.constant 0 : index
      %c0_20 = arith.constant 0 : index
      %c0_21 = arith.constant 0 : index
      %34 = vector.load %arg5[%c0_19, %c0_20, %c0_21] : memref<1x1x256xf32, #tpu.memory_space<vmem>>, vector<1x1x256xf32>
      %35 = vector.shape_cast %34 : vector<1x1x256xf32> to vector<1x256xf32>
      %36 = vector.shape_cast %33 : vector<1x256xf32> to vector<1x1x256xf32>
      tpu.vector_store %arg5[%c0_19, %c0_20, %c0_21], %36 {strides = array<i32>} : memref<1x1x256xf32, #tpu.memory_space<vmem>>, vector<1x1x256xf32>,
    } else {
    }
    %c0 = arith.constant 0 : index
    %c0_1 = arith.constant 0 : index
    %c0_2 = arith.constant 0 : index
    %3 = vector.load %arg2[%c0, %c0_1, %c0_2] : memref<1x4x256xf32, #tpu.memory_space<vmem>>, vector<1x4x256xf32>
    %4 = vector.shape_cast %3 : vector<1x4x256xf32> to vector<4x256xf32>
    %c0_3 = arith.constant 0 : index
    %c0_4 = arith.constant 0 : index
    %c0_5 = arith.constant 0 : index
    %5 = vector.load %arg3[%c0_3, %c0_4, %c0_5] : memref<1x1x256xi32, #tpu.memory_space<vmem>>, vector<1x1x256xi32>
    %6 = vector.shape_cast %5 : vector<1x1x256xi32> to vector<1x256xi32>
    %c0_6 = arith.constant 0 : index
    %c0_7 = arith.constant 0 : index
    %c0_8 = arith.constant 0 : index
    %7 = vector.load %arg4[%c0_6, %c0_7, %c0_8] : memref<1x1x256xf32, #tpu.memory_space<vmem>>, vector<1x1x256xf32>
    %8 = vector.shape_cast %7 : vector<1x1x256xf32> to vector<1x256xf32>
    %cst = arith.constant dense<0xFF800000> : vector<256xf32>
    %9 = vector.multi_reduction <maximumf>, %4, %cst [0] : vector<4x256xf32> to vector<256xf32>
    %10 = vector.shape_cast %9 : vector<256xf32> to vector<1x256xf32>
    %11 = vector.broadcast %10 : vector<1x256xf32> to vector<4x256xf32>
    %12 = arith.subf %4, %11 : vector<4x256xf32>
    %13 = math.exp %12 : vector<4x256xf32>
    %cst_9 = arith.constant dense<0.000000e+00> : vector<256xf32>
    %14 = vector.multi_reduction <add>, %13, %cst_9 [0] : vector<4x256xf32> to vector<256xf32>
    %15 = vector.shape_cast %14 : vector<256xf32> to vector<1x256xf32>
    %16 = math.log %15 : vector<1x256xf32>
    %17 = arith.addf %16, %10 : vector<1x256xf32>
    %18 = tpu.iota {dimensions = array<i32: 0>} : vector<4x256xi32>
    %19 = vector.broadcast %6 : vector<1x256xi32> to vector<4x256xi32>
    %20 = arith.cmpi eq, %18, %19 : vector<4x256xi32>
    %cst_10 = arith.constant 0.000000e+00 : f32
    %21 = vector.broadcast %cst_10 : f32 to vector<4x256xf32>
    %22 = arith.select %20, %4, %21 : vector<4x256xi1>, vector<4x256xf32>
    %cst_11 = arith.constant dense<0.000000e+00> : vector<256xf32>
    %23 = vector.multi_reduction <add>, %22, %cst_11 [0] : vector<4x256xf32> to vector<256xf32>
    %24 = vector.shape_cast %23 : vector<256xf32> to vector<1x256xf32>
    %25 = arith.subf %17, %24 : vector<1x256xf32>
    %26 = arith.mulf %8, %25 : vector<1x256xf32>
    %c0_12 = arith.constant 0 : index
    %c0_13 = arith.constant 0 : index
    %c0_14 = arith.constant 0 : index
    %27 = vector.load %arg5[%c0_12, %c0_13, %c0_14] : memref<1x1x256xf32, #tpu.memory_space<vmem>>, vector<1x1x256xf32>
    %28 = vector.shape_cast %27 : vector<1x1x256xf32> to vector<1x256xf32>
    %29 = arith.addf %28, %26 : vector<1x256xf32>
    %c0_15 = arith.constant 0 : index
    %c0_16 = arith.constant 0 : index
    %c0_17 = arith.constant 0 : index
    %30 = vector.load %arg5[%c0_15, %c0_16, %c0_17] : memref<1x1x256xf32, #tpu.memory_space<vmem>>, vector<1x1x256xf32>
    %31 = vector.shape_cast %30 : vector<1x1x256xf32> to vector<1x256xf32>
    %32 = vector.shape_cast %29 : vector<1x256xf32> to vector<1x1x256xf32>
    tpu.vector_store %arg5[%c0_15, %c0_16, %c0_17], %32 {strides = array<i32>} : memref<1x1x256xf32, #tpu.memory_space<vmem>>, vector<1x1x256xf32>,
    return
  }
  func.func @transform_0(%arg0: i32, %arg1: i32) -> (i32, i32, i32) {
    %c0_i32 = arith.constant 0 : i32
    %c0_i32_0 = arith.constant 0 : i32
    return %arg0, %c0_i32, %arg1 : i32, i32, i32
  }
  func.func @transform_1(%arg0: i32, %arg1: i32) -> (i32, i32, i32) {
    %c0_i32 = arith.constant 0 : i32
    %c0_i32_0 = arith.constant 0 : i32
    return %arg0, %c0_i32, %arg1 : i32, i32, i32
  }
  func.func @transform_2(%arg0: i32, %arg1: i32) -> (i32, i32, i32) {
    %c0_i32 = arith.constant 0 : i32
    %c0_i32_0 = arith.constant 0 : i32
    return %arg0, %c0_i32, %arg1 : i32, i32, i32
  }
  func.func @transform_3(%arg0: i32, %arg1: i32) -> (i32, i32, i32) {
    %c0_i32 = arith.constant 0 : i32
    %c0_i32_0 = arith.constant 0 : i32
    %c0_i32_1 = arith.constant 0 : i32
    return %arg0, %c0_i32, %c0_i32_0 : i32, i32, i32
  }
}

</mosaic_0001>

<llo_original>
// kernel: tpu_custom_call.1
$region0: #{tpu_custom_call.1}
  #allocation0 [shape = 'u32[]', space=smem, size = 0x4, offset = 0x4, fixed_abs, tag = 'smem constant byte address 0x4 - core index']
  #allocation1 [shape = 'u32[72,128]{1,0:T(1,128)}', space=vmem, size = 0x9000, scoped, tag = 'internal scratch']
  %s0 = inlined_call_operand.hbm [shape: f32[2,4,256], index: 0, kind: input, shape index: {}]
  %s1 = inlined_call_operand.hbm [shape: s32[2,1,256], index: 1, kind: input, shape index: {}]
  %s2 = inlined_call_operand.hbm [shape: f32[2,1,256], index: 2, kind: input, shape index: {}]
  %s3 = inlined_call_operand.hbm [shape: f32[2,1,256], index: 3, kind: output, shape index: {}]
  %s4 = sld [smem:[#allocation0]]
  $region61: #{tpu_custom_call.1} parent=0
    _
  %s6 = ssub.s32 1, %s4
  %s7 = scalar_select 0, %s6, %s4
  $region1: #{tpu_custom_call.1} parent=0
    #allocation2 [shape = 'u8[8192]{0}', space=vmem, size = 0x2000, scoped, tag = 'input window, operand 0']
    #allocation3 [shape = 's32[2]{0}', space=sflag, size = 0x8, scoped, tag = 'scoped memory for tpu_custom_call.1']
    #allocation4 [shape = 's32[2]{0}', space=sflag, size = 0x8, scoped, tag = 'scoped memory for tpu_custom_call.1']
    #allocation5 [shape = 'u8[2048]{0}', space=vmem, size = 0x800, scoped, tag = 'input window, operand 1']
    #allocation6 [shape = 's32[2]{0}', space=sflag, size = 0x8, scoped, tag = 'scoped memory for tpu_custom_call.1']
    #allocation7 [shape = 'u8[2048]{0}', space=vmem, size = 0x800, scoped, tag = 'input window, operand 2']
    #allocation8 [shape = 'u8[2048]{0}', space=vmem, size = 0x800, scoped, tag = 'output window, operand 0']
    %8 = vsyncpa [#allocation3], 0
    %s9 = scalar_lea.sflag [#allocation3], 1
    %10 = vsyncpa %s9, 0
    %11 = vsyncpa [#allocation6], 0
    %s12 = scalar_lea.sflag [#allocation6], 1
    %13 = vsyncpa %s12, 0
    %14 = vsyncpa [#allocation4], 0
    %s15 = scalar_lea.sflag [#allocation4], 1
    %16 = vsyncpa %s15, 0
    loop: start=0, step=1, limit=4
    $region2: #{tpu_custom_call.1} parent=1 // loop_pre_header
      _
    $region3: #{tpu_custom_call.1} parent=1 // loop_header
      %s18 = sphi 0, %s22
      %p19 = scmp.ge.s32.totalorder %s18, 4
      %s25 = sphi 0, %s37
      %s26 = sphi 0, %s33
      %s27 = sphi 0, %s25
      %s28 = sphi 0, %s26
      %s29 = sphi 0, %s27
      %s30 = sphi 0, %s28
      %s42 = sphi 0, %s44
      %s45 = sphi 0, %s42
      %s46 = sphi 0, %s45
      %s62 = sphi 0, %s46
      %s70 = sphi 0, %s72
      %s73 = sphi 0, %s70
      %s74 = sphi 0, %s73
      %s90 = sphi 0, %s74
      %s98 = sphi 0, %s100
      %s101 = sphi 0, %s98
      %s102 = sphi 0, %s101
      %s118 = sphi 0, %s102
      %s124 = sphi 0, %s126
      %s127 = sphi 0, %s124
      %s128 = sphi 0, %s127
      %s144 = sphi 0, %s128
    $region4: #{tpu_custom_call.1} parent=1 // loop_header_branch
      %21 = sbr.rel (%p19) target = $region8
    $region5: #{tpu_custom_call.1} parent=1 // loop_body
      %s23 = ssub.s32 %s18, 1
      %s24 = ssub.s32 %s18, 2
      %s31 = sadd.s32 1, %s26
      %p32 = scmp.ge.s32.totalorder %s31, 1
      %s33 = scalar_select %p32, 0, %s31
      %s34 = sadd.s32 1, %s25
      %s35 = scalar_select %p32, %s34, %s25
      %p36 = scmp.ge.s32.totalorder %s35, 2
      %s37 = scalar_select %p36, 0, %s35
      %s38 = ssub.s32 %s25, %s37
      %s39 = ssub.s32 %s26, %s33
      %s40 = sor.u32 %s38, %s39
      %p41 = scmp.eq.s32.totalorder %s40, 0
      %s43 = sadd.s32 %s42, 1
      %s44 = scalar_select %p41, %s42, %s43
      %p47 = pneg %p41
      %p48 = scmp.eq.s32.totalorder %s18, 1
      %p49 = por %p47, %p48
      %p50 = scmp.ne.s32.totalorder %s42, %s45
      %p51 = scmp.eq.s32.totalorder %s18, 0
      %p52 = por %p50, %p51
      %p53 = scmp.ne.s32.totalorder %s42, %s45
      %p54 = scmp.eq.s32.totalorder %s23, 1
      %p55 = por %p53, %p54
      %p56 = scmp.ne.s32.totalorder %s45, %s46
      %p57 = scmp.eq.s32.totalorder %s23, 0
      %p58 = por %p56, %p57
      %p59 = scmp.ne.s32.totalorder %s45, %s46
      %p60 = scmp.eq.s32.totalorder %s24, 1
      %p61 = por %p59, %p60
      %p63 = scmp.ne.s32.totalorder %s46, %s62
      %p64 = scmp.eq.s32.totalorder %s24, 0
      %p65 = por %p63, %p64
      %s66 = ssub.s32 %s25, %s37
      %s67 = ssub.s32 %s26, %s33
      %s68 = sor.u32 %s66, %s67
      %p69 = scmp.eq.s32.totalorder %s68, 0
      %s71 = sadd.s32 %s70, 1
      %s72 = scalar_select %p69, %s70, %s71
      %p75 = pneg %p69
      %p76 = scmp.eq.s32.totalorder %s18, 1
      %p77 = por %p75, %p76
      %p78 = scmp.ne.s32.totalorder %s70, %s73
      %p79 = scmp.eq.s32.totalorder %s18, 0
      %p80 = por %p78, %p79
      %p81 = scmp.ne.s32.totalorder %s70, %s73
      %p82 = scmp.eq.s32.totalorder %s23, 1
      %p83 = por %p81, %p82
      %p84 = scmp.ne.s32.totalorder %s73, %s74
      %p85 = scmp.eq.s32.totalorder %s23, 0
      %p86 = por %p84, %p85
      %p87 = scmp.ne.s32.totalorder %s73, %s74
      %p88 = scmp.eq.s32.totalorder %s24, 1
      %p89 = por %p87, %p88
      %p91 = scmp.ne.s32.totalorder %s74, %s90
      %p92 = scmp.eq.s32.totalorder %s24, 0
      %p93 = por %p91, %p92
      %s94 = ssub.s32 %s25, %s37
      %s95 = ssub.s32 %s26, %s33
      %s96 = sor.u32 %s94, %s95
      %p97 = scmp.eq.s32.totalorder %s96, 0
      %s99 = sadd.s32 %s98, 1
      %s100 = scalar_select %p97, %s98, %s99
      %p103 = pneg %p97
      %p104 = scmp.eq.s32.totalorder %s18, 1
      %p105 = por %p103, %p104
      %p106 = scmp.ne.s32.totalorder %s98, %s101
      %p107 = scmp.eq.s32.totalorder %s18, 0
      %p108 = por %p106, %p107
      %p109 = scmp.ne.s32.totalorder %s98, %s101
      %p110 = scmp.eq.s32.totalorder %s23, 1
      %p111 = por %p109, %p110
      %p112 = scmp.ne.s32.totalorder %s101, %s102
      %p113 = scmp.eq.s32.totalorder %s23, 0
      %p114 = por %p112, %p113
      %p115 = scmp.ne.s32.totalorder %s101, %s102
      %p116 = scmp.eq.s32.totalorder %s24, 1
      %p117 = por %p115, %p116
      %p119 = scmp.ne.s32.totalorder %s102, %s118
      %p120 = scmp.eq.s32.totalorder %s24, 0
      %p121 = por %p119, %p120
      %s122 = ssub.s32 %s25, %s37
      %p123 = scmp.eq.s32.totalorder %s122, 0
      %s125 = sadd.s32 %s124, 1
      %s126 = scalar_select %p123, %s124, %s125
      %p129 = pneg %p123
      %p130 = scmp.eq.s32.totalorder %s18, 1
      %p131 = por %p129, %p130
      %p132 = scmp.ne.s32.totalorder %s124, %s127
      %p133 = scmp.eq.s32.totalorder %s18, 0
      %p134 = por %p132, %p133
      %p135 = scmp.ne.s32.totalorder %s124, %s127
      %p136 = scmp.eq.s32.totalorder %s23, 1
      %p137 = por %p135, %p136
      %p138 = scmp.ne.s32.totalorder %s127, %s128
      %p139 = scmp.eq.s32.totalorder %s23, 0
      %p140 = por %p138, %p139
      %p141 = scmp.ne.s32.totalorder %s127, %s128
      %p142 = scmp.eq.s32.totalorder %s24, 1
      %p143 = por %p141, %p142
      %p145 = scmp.ne.s32.totalorder %s128, %s144
      %p146 = scmp.eq.s32.totalorder %s24, 0
      %p147 = por %p145, %p146
      %p148 = scmp.le.s32.totalorder 1, %s18
      %p149 = scmp.lt.s32.totalorder %s18, 3
      %p150 = pnand %p148, %p149
      %p151 = pneg %p150
      // Predicated region
      $region9: #{tpu_custom_call.1} parent=5 // pred_check
        _
      $region10: #{tpu_custom_call.1} parent=5 // pred_check_branch
        %153 = sbr.rel (%p150) target = $region12
      $region11: #{tpu_custom_call.1} parent=5 // pred_region
        %s154 = ssub.s32 %s18, 1
      $region12: #{tpu_custom_call.1} parent=5 // pred_fallthru
        _
      %p155 = scmp.lt.s32.totalorder %s18, 2
      // Predicated region
      $region13: #{tpu_custom_call.1} parent=5 // pred_check
        %p156 = pneg %p155
      $region14: #{tpu_custom_call.1} parent=5 // pred_check_branch
        %158 = sbr.rel (%p156) target = $region16
      $region15: #{tpu_custom_call.1} parent=5 // pred_region
        // Predicated region
        $region17: #{tpu_custom_call.1} parent=15 // pred_check
          %p159 = pneg %p52
        $region18: #{tpu_custom_call.1} parent=15 // pred_check_branch
          %161 = sbr.rel (%p159) target = $region20
        $region19: #{tpu_custom_call.1} parent=15 // pred_region
          %s162 = sand.u32 %s42, 1
          %s163 = scalar_lea.sflag [#allocation3], %s162
          %s164 = sand.u32 %s42, 1
          %s165 = smul.addr %s164, 8
          %s166 = scalar_lea.vmem [#allocation2], %s165
          %s167 = smul.u32 2, %s26
          %169 = vsyncadd %s163, 0
          %s170 = smul.addr %s25, 2
          %s171 = sadd.s32 %s167, %s170
          %s172 = smul.addr %s171, 4
          %s173 = scalar_lea.hbm %s0, %s172
          %s175 = sshll.u32 %s173, 4
          %s176 = int_to_ptr.hbm [resolvable:$true] %s175
          %s177 = sshll.u32 %s166, 4
          %s178 = int_to_ptr.vmem [resolvable:$true] %s177
          %180 = dma.hbm_to_vmem [thread:$0]  %s176, 128, %s178, %s163
        $region20: #{tpu_custom_call.1} parent=15 // pred_fallthru
          _
        // Predicated region
        $region21: #{tpu_custom_call.1} parent=15 // pred_check
          %p181 = pneg %p80
        $region22: #{tpu_custom_call.1} parent=15 // pred_check_branch
          %183 = sbr.rel (%p181) target = $region24
        $region23: #{tpu_custom_call.1} parent=15 // pred_region
          %s184 = sand.u32 %s18, 1
          %s185 = scalar_lea.sflag [#allocation6], %s184
          %s186 = sand.u32 %s70, 1
          %s187 = smul.addr %s186, 2
          %s188 = scalar_lea.vmem [#allocation5], %s187
          %s189 = smul.u32 2, %s26
          %191 = vsyncadd %s185, 0
          %s192 = smul.addr %s25, 2
          %s193 = sadd.s32 %s189, %s192
          %s194 = scalar_lea.hbm %s1, %s193
          %s196 = sshll.u32 %s194, 4
          %s197 = int_to_ptr.hbm [resolvable:$true] %s196
          %s198 = sshll.u32 %s188, 4
          %s199 = int_to_ptr.vmem [resolvable:$true] %s198
          %201 = dma.hbm_to_vmem [thread:$0]  %s197, 32, %s199, %s185
        $region24: #{tpu_custom_call.1} parent=15 // pred_fallthru
          _
        // Predicated region
        $region25: #{tpu_custom_call.1} parent=15 // pred_check
          %p202 = pneg %p108
        $region26: #{tpu_custom_call.1} parent=15 // pred_check_branch
          %204 = sbr.rel (%p202) target = $region28
        $region27: #{tpu_custom_call.1} parent=15 // pred_region
          %s205 = sand.u32 %s18, 1
          %s206 = scalar_lea.sflag [#allocation6], %s205
          %s207 = sand.u32 %s98, 1
          %s208 = smul.addr %s207, 2
          %s209 = scalar_lea.vmem [#allocation7], %s208
          %s210 = smul.u32 2, %s26
          %212 = vsyncadd %s206, 0
          %s213 = smul.addr %s25, 2
          %s214 = sadd.s32 %s210, %s213
          %s215 = scalar_lea.hbm %s2, %s214
          %s217 = sshll.u32 %s215, 4
          %s218 = int_to_ptr.hbm [resolvable:$true] %s217
          %s219 = sshll.u32 %s209, 4
          %s220 = int_to_ptr.vmem [resolvable:$true] %s219
          %222 = dma.hbm_to_vmem [thread:$0]  %s218, 32, %s220, %s206
        $region28: #{tpu_custom_call.1} parent=15 // pred_fallthru
          _
      $region16: #{tpu_custom_call.1} parent=5 // pred_fallthru
        _
      %p223 = scmp.le.s32.totalorder 1, %s18
      %p224 = scmp.lt.s32.totalorder %s18, 3
      %p225 = pnand %p223, %p224
      %p226 = pneg %p225
      // Predicated region
      $region29: #{tpu_custom_call.1} parent=5 // pred_check
        _
      $region30: #{tpu_custom_call.1} parent=5 // pred_check_branch
        %228 = sbr.rel (%p225) target = $region32
      $region31: #{tpu_custom_call.1} parent=5 // pred_region
        %s229 = ssub.s32 %s18, 1
        %s230 = sand.u32 %s45, 1
        %s231 = scalar_lea.sflag [#allocation3], %s230
        %s232 = sand.u32 %s45, 1
        %s233 = smul.addr %s232, 8
        %s234 = scalar_lea.vmem [#allocation2], %s233
        // Predicated region
        $region33: #{tpu_custom_call.1} parent=31 // pred_check
          %p235 = pneg %p58
        $region34: #{tpu_custom_call.1} parent=31 // pred_check_branch
          %237 = sbr.rel (%p235) target = $region36
        $region35: #{tpu_custom_call.1} parent=31 // pred_region
          %239 = dma.done %s231, 128
        $region36: #{tpu_custom_call.1} parent=31 // pred_fallthru
          _
        %s240 = sand.u32 %s23, 1
        %s241 = scalar_lea.sflag [#allocation6], %s240
        %s242 = sand.u32 %s73, 1
        %s243 = smul.addr %s242, 2
        %s244 = scalar_lea.vmem [#allocation5], %s243
        // Predicated region
        $region37: #{tpu_custom_call.1} parent=31 // pred_check
          %p245 = pneg %p86
        $region38: #{tpu_custom_call.1} parent=31 // pred_check_branch
          %247 = sbr.rel (%p245) target = $region40
        $region39: #{tpu_custom_call.1} parent=31 // pred_region
          %249 = dma.done %s241, 32
        $region40: #{tpu_custom_call.1} parent=31 // pred_fallthru
          _
        %s250 = sand.u32 %s23, 1
        %s251 = scalar_lea.sflag [#allocation6], %s250
        %s252 = sand.u32 %s101, 1
        %s253 = smul.addr %s252, 2
        %s254 = scalar_lea.vmem [#allocation7], %s253
        // Predicated region
        $region41: #{tpu_custom_call.1} parent=31 // pred_check
          %p255 = pneg %p114
        $region42: #{tpu_custom_call.1} parent=31 // pred_check_branch
          %257 = sbr.rel (%p255) target = $region44
        $region43: #{tpu_custom_call.1} parent=31 // pred_region
          %259 = dma.done %s251, 32
        $region44: #{tpu_custom_call.1} parent=31 // pred_fallthru
          _
        %s260 = sand.u32 %s45, 1
        %s261 = scalar_lea.sflag [#allocation3], %s260
        %s262 = sand.u32 %s45, 1
        %s263 = smul.addr %s262, 8
        %s264 = scalar_lea.vmem [#allocation2], %s263
        %p265 = pneg %p58
        %p266 = pneg %p55
        %s267 = sand.u32 %s23, 1
        %s268 = scalar_lea.sflag [#allocation6], %s267
        %s269 = sand.u32 %s73, 1
        %s270 = smul.addr %s269, 2
        %s271 = scalar_lea.vmem [#allocation5], %s270
        %p272 = pneg %p86
        %p273 = pneg %p83
        %s274 = sand.u32 %s23, 1
        %s275 = scalar_lea.sflag [#allocation6], %s274
        %s276 = sand.u32 %s101, 1
        %s277 = smul.addr %s276, 2
        %s278 = scalar_lea.vmem [#allocation7], %s277
        %p279 = pneg %p114
        %p280 = pneg %p111
        %p281 = pneg %p140
        %p282 = pneg %p137
        %s283 = sand.u32 %s127, 1
        %s284 = scalar_lea.sflag [#allocation4], %s283
        %s285 = sand.u32 %s127, 1
        %s286 = smul.addr %s285, 2
        %s287 = scalar_lea.vmem [#allocation8], %s286
        %s288 = smul.u32 2, %s28
        %s289 = smul.u32 2, %s28
        %s290 = smul.u32 2, %s28
        %p291 = scmp.eq.s32.totalorder %s28, 0
        // Predicated region
        $region45: #{tpu_custom_call.1} parent=31 // pred_check
          %p292 = pneg %p291
        $region46: #{tpu_custom_call.1} parent=31 // pred_check_branch
          %294 = sbr.rel (%p292) target = $region48
        $region47: #{tpu_custom_call.1} parent=31 // pred_region
          %v295 = vlaneseq
          %vm296 = vcmp.ge.s32.totalorder %v295, 0
          %vm297 = vcmp.lt.s32.totalorder %v295, 256
          %vm298 = vmand %vm296, %vm297
          %299 = vst.msk [vmem:[%s287] sm:$0x3] %vm298, 0.0
        $region48: #{tpu_custom_call.1} parent=31 // pred_fallthru
          _
        %v300 = vld [vmem:[%s234] sm:$0xff]
        %v301 = vld [vmem:[%s244] sm:$0x3]
        %v302 = vld [vmem:[%s254] sm:$0x3]
        %304 = vst [vmem:[#allocation1] ss:$2 sm:$0xff] %v300
        %v305 = vld.sshfl [vmem:[#allocation1] sm:$0xff pattern:$0x75316420]
        %v306 = vld.sshfl [vmem:[#allocation1 + $0x8] sm:$0xff pattern:$0x75316420]
        %vm309 = vcmask 1043456
        %v310 = vsel %vm309, %v305, -inf
        %v311 = vrot.slane %v310, 4
        %v312 = vmax.f32 %v310, %v311
        %v313 = vrot.slane %v312, 2
        %v314 = vmax.f32 %v312, %v313
        %v315 = vrot.slane %v314, 1
        %v316 = vmax.f32 %v314, %v315
        %v317 = vsel %vm309, %v306, -inf
        %v318 = vrot.slane %v317, 4
        %v319 = vmax.f32 %v317, %v318
        %v320 = vrot.slane %v319, 2
        %v321 = vmax.f32 %v319, %v320
        %v322 = vrot.slane %v321, 1
        %v323 = vmax.f32 %v321, %v322
        %v326 = vrot.slane %v323, 4
        %v327 = vsel %vm309, %v316, %v326
        %v329 = vsub.f32 %v300, %v327
        %v330 = vmul.f32 %v329, 1.442695
        %v331 = vpow.pop %v330
        %333 = vst [vmem:[#allocation1] ss:$2 sm:$0xff] %v331
        %v334 = vld.sshfl [vmem:[#allocation1] sm:$0xff pattern:$0x75316420]
        %v335 = vld.sshfl [vmem:[#allocation1 + $0x8] sm:$0xff pattern:$0x75316420]
        %v338 = vsel %vm309, %v334, 0.0
        %v339 = vrot.slane %v338, 4
        %v340 = vadd.f32 %v338, %v339
        %v341 = vrot.slane %v340, 2
        %v342 = vadd.f32 %v340, %v341
        %v343 = vrot.slane %v342, 1
        %v344 = vadd.f32 %v342, %v343
        %v345 = vsel %vm309, %v335, 0.0
        %v346 = vrot.slane %v345, 4
        %v347 = vadd.f32 %v345, %v346
        %v348 = vrot.slane %v347, 2
        %v349 = vadd.f32 %v347, %v348
        %v350 = vrot.slane %v349, 1
        %v351 = vadd.f32 %v349, %v350
        %v352 = vlog2.pop %v344
        %v353 = vmul.f32 %v352, 0.6931472
        %v354 = vlog2.pop %v351
        %v355 = vmul.f32 %v354, 0.6931472
        %v356 = vadd.f32 %v353, %v316
        %v357 = vadd.f32 %v355, %v323
        %v358 = vlaneseq
        %v359 = vshrl.u32 %v358, 7
        %v360 = vperm.slane %v301, 0
        %v361 = vperm.slane %v301, 1
        %vm362 = vcmp.eq.s32.totalorder %v359, %v360
        %vm363 = vcmp.eq.s32.totalorder %v359, %v361
        %364 = vst [vmem:[#allocation1] ss:$2 sm:$0xff] %v300
        %v365 = vld.sshfl [vmem:[#allocation1] sm:$0xff pattern:$0x75316420]
        %v366 = vld.sshfl [vmem:[#allocation1 + $0x8] sm:$0xff pattern:$0x75316420]
        %v369 = vsel %vm362, %v365, 0.0
        %v370 = vsel %vm363, %v366, 0.0
        %v371 = vsel %vm309, %v369, 0.0
        %v372 = vrot.slane %v371, 4
        %v373 = vadd.f32 %v371, %v372
        %v374 = vrot.slane %v373, 2
        %v375 = vadd.f32 %v373, %v374
        %v376 = vrot.slane %v375, 1
        %v377 = vadd.f32 %v375, %v376
        %v378 = vsel %vm309, %v370, 0.0
        %v379 = vrot.slane %v378, 4
        %v380 = vadd.f32 %v378, %v379
        %v381 = vrot.slane %v380, 2
        %v382 = vadd.f32 %v380, %v381
        %v383 = vrot.slane %v382, 1
        %v384 = vadd.f32 %v382, %v383
        %v385 = vsub.f32 %v356, %v377
        %v386 = vsub.f32 %v357, %v384
        %v389 = vrot.slane %v386, 7
        %vm390 = vcmask 1040384
        %v391 = vsel %vm390, %v385, %v389
        %v393 = vmul.f32 %v302, %v391
        %v394 = vld [vmem:[%s287] sm:$0x3]
        %v395 = vadd.f32 %v394, %v393
        %v396 = vlaneseq
        %vm397 = vcmp.ge.s32.totalorder %v396, 0
        %vm398 = vcmp.lt.s32.totalorder %v396, 256
        %vm399 = vmand %vm397, %vm398
        %400 = vst.msk [vmem:[%s287] sm:$0x3] %vm399, %v395
        %s401 = sand.u32 %s127, 1
        %s402 = scalar_lea.sflag [#allocation4], %s401
        %s403 = sand.u32 %s127, 1
        %s404 = smul.addr %s403, 2
        %s405 = scalar_lea.vmem [#allocation8], %s404
        // Predicated region
        $region49: #{tpu_custom_call.1} parent=31 // pred_check
          %p406 = pneg %p137
        $region50: #{tpu_custom_call.1} parent=31 // pred_check_branch
          %408 = sbr.rel (%p406) target = $region52
        $region51: #{tpu_custom_call.1} parent=31 // pred_region
          %410 = vsyncadd %s402, 0
          %s411 = smul.addr %s27, 2
          %s412 = scalar_lea.hbm %s3, %s411
          %s414 = sshll.u32 %s405, 4
          %s415 = int_to_ptr.vmem [resolvable:$true] %s414
          %s416 = sshll.u32 %s412, 4
          %s417 = int_to_ptr.hbm [resolvable:$true] %s416
          %419 = dma.vmem_to_hbm [thread:$0]  %s415, 32, %s417, %s402
        $region52: #{tpu_custom_call.1} parent=31 // pred_fallthru
          _
      $region32: #{tpu_custom_call.1} parent=5 // pred_fallthru
        _
      %p420 = scmp.le.s32.totalorder 2, %s18
      // Predicated region
      $region53: #{tpu_custom_call.1} parent=5 // pred_check
        %p421 = pneg %p420
      $region54: #{tpu_custom_call.1} parent=5 // pred_check_branch
        %423 = sbr.rel (%p421) target = $region56
      $region55: #{tpu_custom_call.1} parent=5 // pred_region
        %s424 = ssub.s32 %s18, 2
        // Predicated region
        $region57: #{tpu_custom_call.1} parent=55 // pred_check
          %p425 = pneg %p143
        $region58: #{tpu_custom_call.1} parent=55 // pred_check_branch
          %427 = sbr.rel (%p425) target = $region60
        $region59: #{tpu_custom_call.1} parent=55 // pred_region
          %s428 = sand.u32 %s128, 1
          %s429 = scalar_lea.sflag [#allocation4], %s428
          %s430 = sand.u32 %s128, 1
          %s431 = smul.addr %s430, 2
          %s432 = scalar_lea.vmem [#allocation8], %s431
          %434 = dma.done %s429, 32
        $region60: #{tpu_custom_call.1} parent=55 // pred_fallthru
          _
      $region56: #{tpu_custom_call.1} parent=5 // pred_fallthru
        _
    $region6: #{tpu_custom_call.1} parent=1 // loop_footer
      %s22 = sadd.s32 1, %s18
    $region7: #{tpu_custom_call.1} parent=1 // loop_footer_branch
      %17 = sbr.rel target = $region3
    $region8: #{tpu_custom_call.1} parent=1 // loop_exit
      _
    %435 = vsyncpa [#allocation3], 1
    %s436 = scalar_lea.sflag [#allocation3], 1
    %437 = vsyncpa %s436, 1
    %438 = vsyncpa [#allocation6], 1
    %s439 = scalar_lea.sflag [#allocation6], 1
    %440 = vsyncpa %s439, 1
    %441 = vsyncpa [#allocation4], 1
    %s442 = scalar_lea.sflag [#allocation4], 1
    %443 = vsyncpa %s442, 1

</llo_original>
